<compile_context>
chip_gen: v6e
topology: v6e:2x2x1
jax: 0.10.0
libtpu: 0.0.40
codegen_flags: <defaults>
</compile_context>

<pallas_src>
import math

import jax
import jax.numpy as jnp
from jax.experimental import pallas as pl
from jax.experimental.pallas import tpu as pltpu


# --------------------------------------------------------------------------------------
# Kernels
# --------------------------------------------------------------------------------------
def _noisy_train_kernel(x_ref, wmu_ref, wsig_ref, bias_ref, eps_in_ref, eps_out_ref,
                        o_ref, acc_ref):
    # x_ref: (tm, tk)          wmu_ref / wsig_ref: (tk, tn)  (pre-transposed weights)
    # bias_ref: (1, tn) f32    eps_in_ref: (1, tk) f32       eps_out_ref: (1, tn) f32
    k = pl.program_id(2)

    @pl.when(k == 0)
    def _():
        acc_ref[...] = jnp.zeros_like(acc_ref)

    x = x_ref[...]
    # mu path:    x @ Wmu
    mu = jnp.dot(x, wmu_ref[...], preferred_element_type=jnp.float32)
    # sigma path: (x * eps_in) @ Wsig — product in f32, rounded once to the MXU dtype.
    xs = (x.astype(jnp.float32) * eps_in_ref[...]).astype(wsig_ref.dtype)
    sig = jnp.dot(xs, wsig_ref[...], preferred_element_type=jnp.float32)
    # Single accumulator; eps_out applied in-loop (VALU slot is idle under the MXU/DMA).
    acc_ref[...] += mu + eps_out_ref[...] * sig

    @pl.when(k == pl.num_programs(2) - 1)
    def _():
        o_ref[...] = (acc_ref[...] + bias_ref[...]).astype(o_ref.dtype)


def _linear_mu_kernel(x_ref, wmu_ref, bias_ref, o_ref, acc_ref):
    # Eval path: plain y = x @ Wmu + b_mu; sigma / eps are never streamed.
    k = pl.program_id(2)

    @pl.when(k == 0)
    def _():
        acc_ref[...] = jnp.zeros_like(acc_ref)

    acc_ref[...] += jnp.dot(x_ref[...], wmu_ref[...],
                            preferred_element_type=jnp.float32)

    @pl.when(k == pl.num_programs(2) - 1)
    def _():
        o_ref[...] = (acc_ref[...] + bias_ref[...]).astype(o_ref.dtype)


# --------------------------------------------------------------------------------------
# Helpers
# --------------------------------------------------------------------------------------
def _round_up(x, m):
    return ((x + m - 1) // m) * m


def _pad2(a, rows, cols, dtype):
    a = jnp.asarray(a)
    return jnp.pad(a, ((0, rows - a.shape[0]), (0, cols - a.shape[1]))).astype(dtype)


def _pad_row(v, cols, dtype):
    v = jnp.asarray(v)
    return jnp.pad(v, (0, cols - v.shape[0])).reshape(1, cols).astype(dtype)


def _vmem_budget_bytes():
    # Generation-aware budget: 3/4 of physical VMEM, capped at 96 MiB.
    #   v7x (64 MiB/TC)  -> 48 MiB     v5e/v6e (128 MiB) -> 96 MiB
    try:
        phys = pltpu.get_tpu_info().vmem_capacity_bytes
    except Exception:
        phys = 64 * 1024 * 1024  # assume the smallest (v7x) if the query is unavailable
    return min((phys * 3) // 4, 96 * 1024 * 1024)


def _choose_tiles(in_dim, out_dim, tm_cap, itemsize, budget,
                  tn_target=512, tk_target=2048):
    """Pick (tn, tk), largest tiles whose double-buffered working set fits the budget."""
    tn = min(tn_target, _round_up(out_dim, 128))
    tk = min(tk_target, _round_up(in_dim, 128))

    def live_bytes(tm, tn, tk):
        x_b = 2 * tm * tk * itemsize        # double-buffered activations
        w_b = 2 * 2 * tk * tn * itemsize    # two weight streams, double-buffered
        rows = 2 * (2 * tn + tk) * 4        # bias/eps_out/eps_in rows, double-buffered
        acc = tm * tn * 4                   # single f32 accumulator scratch
        out = 2 * tm * tn * 4               # double-buffered f32 output
        return x_b + w_b + rows + acc + out

    while live_bytes(tm_cap, tn, tk) > budget and tk > 512:
        tk = max(512, (tk // 2) // 128 * 128)
    while live_bytes(tm_cap, tn, tk) > budget and tn > 256:
        tn = max(256, (tn // 2) // 128 * 128)
    return tn, tk


# --------------------------------------------------------------------------------------
# NoisyLinear layer with one-time parameter preparation
# --------------------------------------------------------------------------------------
class NoisyLinearPallas:
    """NoisyLinear whose weights are prepared ONCE ((in, out) layout, tile-padded, cast).

    Per forward only x, eps_in, eps_out and the fused bias row are padded — matching the
    PyTorch module's semantics while keeping weight HBM traffic inside the kernel only.
    """

    def __init__(self, weight_mu, weight_sigma, bias_mu, bias_sigma,
                 use_bf16_matmul=False, tm_cap=512):
        out_dim, in_dim = weight_mu.shape
        self.in_dim, self.out_dim = in_dim, out_dim
        self.compute_dtype = jnp.bfloat16 if use_bf16_matmul else jnp.float32
        self.itemsize = 2 if use_bf16_matmul else 4
        self.tm_cap = tm_cap

        self.vmem_budget = _vmem_budget_bytes()
        self.tn, self.tk = _choose_tiles(in_dim, out_dim, tm_cap, self.itemsize,
                                         self.vmem_budget)
        self.n_pad = _round_up(out_dim, self.tn)
        self.k_pad = _round_up(in_dim, self.tk)

        # One-time layout plumbing: (out, in) -> (in, out), zero-pad, cast.
        self.wmu_p = _pad2(jnp.asarray(weight_mu).T, self.k_pad, self.n_pad,
                           self.compute_dtype)
        self.wsig_p = _pad2(jnp.asarray(weight_sigma).T, self.k_pad, self.n_pad,
                            self.compute_dtype)
        self.bias_mu = jnp.asarray(bias_mu, jnp.float32)
        self.bias_sigma = jnp.asarray(bias_sigma, jnp.float32)
        self.bias_mu_row = _pad_row(self.bias_mu, self.n_pad, jnp.float32)

    # ------------------------------------------------------------------
    def _grid_and_specs(self, batch):
        # Raise tm (up to tm_cap) before allowing a second m-step: weight tiles are
        # streamed once per i with the (i, j, k) grid and (k, j) weight index map.
        tm = min(self.tm_cap, _round_up(batch, 8))
        m_pad = _round_up(batch, tm)
        tn = self.tn
        tk = self.tk
        # Guarantee >=2 steps along a "parallel" axis so both v7x TensorCores get work.
        if m_pad // tm == 1 and self.n_pad // tn == 1 and tn % 256 == 0:
            tn //= 2
        grid = (m_pad // tm, self.n_pad // tn, self.k_pad // tk)

        x_spec = pl.BlockSpec((tm, tk), lambda i, j, k: (i, k))
        w_spec = pl.BlockSpec((tk, tn), lambda i, j, k: (k, j))
        row_n_spec = pl.BlockSpec((1, tn), lambda i, j, k: (0, j))
        row_k_spec = pl.BlockSpec((1, tk), lambda i, j, k: (0, k))
        out_spec = pl.BlockSpec((tm, tn), lambda i, j, k: (i, j))
        return tm, m_pad, tn, grid, x_spec, w_spec, row_n_spec, row_k_spec, out_spec

    # ------------------------------------------------------------------
    def __call__(self, x, eps_in=None, eps_out=None, training=True):
        batch, in_dim = x.shape
        assert in_dim == self.in_dim
        (tm, m_pad, tn, grid, x_spec, w_spec,
         row_n_spec, row_k_spec, out_spec) = self._grid_and_specs(batch)

        xp = _pad2(x, m_pad, self.k_pad, self.compute_dtype)
        cparams = pltpu.CompilerParams(
            dimension_semantics=("parallel", "parallel", "arbitrary"),
            vmem_limit_bytes=self.vmem_budget,
        )

        if training:
            assert eps_in is not None and eps_out is not None
            eps_in_row = _pad_row(eps_in, self.k_pad, jnp.float32)
            eps_out_row = _pad_row(eps_out, self.n_pad, jnp.float32)
            # Fused bias (O(out)) — drops a DMA stream and a write-back VPU op.
            bias_row = _pad_row(self.bias_mu + self.bias_sigma * jnp.asarray(eps_out),
                                self.n_pad, jnp.float32)
            cost = pl.CostEstimate(
                flops=2 * 2 * m_pad * self.n_pad * self.k_pad,
                transcendentals=0,
                bytes_accessed=(xp.size + self.wmu_p.size + self.wsig_p.size)
                * self.itemsize + m_pad * self.n_pad * 4,
            )
            y_pad = pl.pallas_call(
                _noisy_train_kernel,
                out_shape=jax.ShapeDtypeStruct((m_pad, self.n_pad), jnp.float32),
                grid_spec=pltpu.PrefetchScalarGridSpec(
                    num_scalar_prefetch=0,
                    grid=grid,
                    in_specs=[x_spec, w_spec, w_spec, row_n_spec, row_k_spec,
                              row_n_spec],
                    out_specs=out_spec,
                    scratch_shapes=[pltpu.VMEM((tm, tn), jnp.float32)],
                ),
                compiler_params=cparams,
                cost_estimate=cost,
            )(xp, self.wmu_p, self.wsig_p, bias_row, eps_in_row, eps_out_row)
        else:
            cost = pl.CostEstimate(
                flops=2 * m_pad * self.n_pad * self.k_pad,
                transcendentals=0,
                bytes_accessed=(xp.size + self.wmu_p.size) * self.itemsize
                + m_pad * self.n_pad * 4,
            )
            y_pad = pl.pallas_call(
                _linear_mu_kernel,
                out_shape=jax.ShapeDtypeStruct((m_pad, self.n_pad), jnp.float32),
                grid_spec=pltpu.PrefetchScalarGridSpec(
                    num_scalar_prefetch=0,
                    grid=grid,
                    in_specs=[x_spec, w_spec, row_n_spec],
                    out_specs=out_spec,
                    scratch_shapes=[pltpu.VMEM((tm, tn), jnp.float32)],
                ),
                compiler_params=cparams,
                cost_estimate=cost,
            )(xp, self.wmu_p, self.bias_mu_row)

        return y_pad[:batch, :self.out_dim]


# --------------------------------------------------------------------------------------
# Noise sampling glue (matches torch _scale_noise); kept outside the kernel just like
# the PyTorch module keeps it outside F.linear.
# --------------------------------------------------------------------------------------
def scale_noise(key, size):
    x = jax.random.normal(key, (size,), dtype=jnp.float32)
    return jnp.sign(x) * jnp.sqrt(jnp.abs(x))


def _reference(x, wmu, wsig, bmu, bsig, eps_in, eps_out, training):
    if training:
        w = wmu + wsig * jnp.outer(eps_out, eps_in)
        b = bmu + bsig * eps_out
        return x @ w.T + b
    return x @ wmu.T + bmu


def _run_case(key, batch, in_dim, out_dim, std_init=0.5):
    k_x, k_wmu, k_bmu, k_ein, k_eout = jax.random.split(key, 5)
    mu_range = 1.0 / math.sqrt(in_dim)
    weight_mu = jax.random.uniform(k_wmu, (out_dim, in_dim), jnp.float32,
                                   minval=-mu_range, maxval=mu_range)
    weight_sigma = jnp.full((out_dim, in_dim), std_init / math.sqrt(in_dim), jnp.float32)
    bias_mu = jax.random.uniform(k_bmu, (out_dim,), jnp.float32,
                                 minval=-mu_range, maxval=mu_range)
    bias_sigma = jnp.full((out_dim,), std_init / math.sqrt(out_dim), jnp.float32)
    eps_in = scale_noise(k_ein, in_dim)
    eps_out = scale_noise(k_eout, out_dim)
    x = jax.random.normal(k_x, (batch, in_dim), dtype=jnp.float32)

    # Parameters prepared once (transpose/pad/cast hoisted out of the per-call path).
    layer = NoisyLinearPallas(weight_mu, weight_sigma, bias_mu, bias_sigma,
                              use_bf16_matmul=False)

    # Training-mode forward (noisy weights via the factored reformulation).
    y = jax.block_until_ready(layer(x, eps_in, eps_out, training=True))
    y_ref = _reference(x, weight_mu, weight_sigma, bias_mu, bias_sigma,
                       eps_in, eps_out, True)
    assert y.shape == (batch, out_dim)
    assert jnp.allclose(y, y_ref, atol=1e-4, rtol=1e-4), "training mismatch"

    # Eval-mode forward (mu-only kernel; sigma / eps never touched).
    y_eval = jax.block_until_ready(layer(x, training=False))
    y_eval_ref = _reference(x, weight_mu, weight_sigma, bias_mu, bias_sigma,
                            eps_in, eps_out, False)
    assert jnp.allclose(y_eval, y_eval_ref, atol=1e-4, rtol=1e-4), "eval mismatch"


if __name__ == "__main__":
    root = jax.random.PRNGKey(0)
    k1, k2 = jax.random.split(root, 2)

    # Small, tile-aligned-after-padding case (typical hidden sizes for the module).
    _run_case(k1, batch=8, in_dim=32, out_dim=32)
    # Non-aligned case: exercises padding/slicing and the "split tn for 2 parallel
    # grid steps" path.
    _run_case(k2, batch=20, in_dim=200, out_dim=150)

    print("KERNEL_OK")
</pallas_src>

<mosaic_0001>
module attributes {stable_mosaic.version = 11 : i64} {
  func.func @_noisy_train_kernel(%arg0: i32, %arg1: i32, %arg2: i32, %arg3: memref<8x128xf32, #tpu.memory_space<vmem>>, %arg4: memref<128x128xf32, #tpu.memory_space<vmem>>, %arg5: memref<128x128xf32, #tpu.memory_space<vmem>>, %arg6: memref<1x128xf32, #tpu.memory_space<vmem>>, %arg7: memref<1x128xf32, #tpu.memory_space<vmem>>, %arg8: memref<1x128xf32, #tpu.memory_space<vmem>>, %arg9: memref<8x128xf32, #tpu.memory_space<vmem>>, %arg10: memref<8x128xf32, #tpu.memory_space<vmem>>) attributes {dimension_semantics = [#tpu.dimension_semantics<parallel>, #tpu.dimension_semantics<parallel>, #tpu.dimension_semantics<arbitrary>], iteration_bounds = array<i64: 1, 1, 1>, scalar_prefetch = 0 : i64, scratch_operands = 1 : i64, tpu.core_type = #tpu.core_type<tc>, window_params = [{transform_indices = @transform_0, window_bounds = array<i64: 8, 128>}, {transform_indices = @transform_1, window_bounds = array<i64: 128, 128>}, {transform_indices = @transform_2, window_bounds = array<i64: 128, 128>}, {transform_indices = @transform_3, window_bounds = array<i64: 1, 128>}, {transform_indices = @transform_4, window_bounds = array<i64: 1, 128>}, {transform_indices = @transform_5, window_bounds = array<i64: 1, 128>}, {transform_indices = @transform_6, window_bounds = array<i64: 8, 128>}]} {
    %c0_i32 = arith.constant 0 : i32
    %0 = arith.cmpi eq, %arg2, %c0_i32 : i32
    %1 = arith.extui %0 : i1 to i32
    %c0_i32_0 = arith.constant 0 : i32
    %2 = arith.cmpi ne, %1, %c0_i32_0 : i32
    scf.if %2 {
      %cst_17 = arith.constant 0.000000e+00 : f32
      %21 = vector.broadcast %cst_17 : f32 to vector<8x128xf32>
      %c0_18 = arith.constant 0 : index
      %c0_19 = arith.constant 0 : index
      %22 = vector.load %arg10[%c0_18, %c0_19] : memref<8x128xf32, #tpu.memory_space<vmem>>, vector<8x128xf32>
      tpu.vector_store %arg10[%c0_18, %c0_19], %21 {strides = array<i32>} : memref<8x128xf32, #tpu.memory_space<vmem>>, vector<8x128xf32>,
    } else {
    }
    %c0 = arith.constant 0 : index
    %c0_1 = arith.constant 0 : index
    %3 = vector.load %arg3[%c0, %c0_1] : memref<8x128xf32, #tpu.memory_space<vmem>>, vector<8x128xf32>
    %c0_2 = arith.constant 0 : index
    %c0_3 = arith.constant 0 : index
    %4 = vector.load %arg4[%c0_2, %c0_3] : memref<128x128xf32, #tpu.memory_space<vmem>>, vector<128x128xf32>
    %cst = arith.constant dense<0.000000e+00> : vector<8x128xf32>
    %5 = tpu.matmul %3, %4, %cst {dimension_numbers = #tpu.dot_dimension_numbers<[1], [0], [0], [1], [0, 0, 1, 1], [], []>} : vector<8x128xf32>, vector<128x128xf32>, vector<8x128xf32> -> vector<8x128xf32>
    %c0_4 = arith.constant 0 : index
    %c0_5 = arith.constant 0 : index
    %6 = vector.load %arg7[%c0_4, %c0_5] : memref<1x128xf32, #tpu.memory_space<vmem>>, vector<1x128xf32>
    %7 = vector.broadcast %6 : vector<1x128xf32> to vector<8x128xf32>
    %8 = arith.mulf %3, %7 : vector<8x128xf32>
    %c0_6 = arith.constant 0 : index
    %c0_7 = arith.constant 0 : index
    %9 = vector.load %arg5[%c0_6, %c0_7] : memref<128x128xf32, #tpu.memory_space<vmem>>, vector<128x128xf32>
    %cst_8 = arith.constant dense<0.000000e+00> : vector<8x128xf32>
    %10 = tpu.matmul %8, %9, %cst_8 {dimension_numbers = #tpu.dot_dimension_numbers<[1], [0], [0], [1], [0, 0, 1, 1], [], []>} : vector<8x128xf32>, vector<128x128xf32>, vector<8x128xf32> -> vector<8x128xf32>
    %c0_9 = arith.constant 0 : index
    %c0_10 = arith.constant 0 : index
    %11 = vector.load %arg10[%c0_9, %c0_10] : memref<8x128xf32, #tpu.memory_space<vmem>>, vector<8x128xf32>
    %c0_11 = arith.constant 0 : index
    %c0_12 = arith.constant 0 : index
    %12 = vector.load %arg8[%c0_11, %c0_12] : memref<1x128xf32, #tpu.memory_space<vmem>>, vector<1x128xf32>
    %13 = vector.broadcast %12 : vector<1x128xf32> to vector<8x128xf32>
    %14 = arith.mulf %13, %10 : vector<8x128xf32>
    %15 = arith.addf %5, %14 : vector<8x128xf32>
    %16 = arith.addf %11, %15 : vector<8x128xf32>
    %c0_13 = arith.constant 0 : index
    %c0_14 = arith.constant 0 : index
    %17 = vector.load %arg10[%c0_13, %c0_14] : memref<8x128xf32, #tpu.memory_space<vmem>>, vector<8x128xf32>
    tpu.vector_store %arg10[%c0_13, %c0_14], %16 {strides = array<i32>} : memref<8x128xf32, #tpu.memory_space<vmem>>, vector<8x128xf32>,
    %c0_i32_15 = arith.constant 0 : i32
    %18 = arith.cmpi eq, %arg2, %c0_i32_15 : i32
    %19 = arith.extui %18 : i1 to i32
    %c0_i32_16 = arith.constant 0 : i32
    %20 = arith.cmpi ne, %19, %c0_i32_16 : i32
    scf.if %20 {
      %c0_17 = arith.constant 0 : index
      %c0_18 = arith.constant 0 : index
      %21 = vector.load %arg10[%c0_17, %c0_18] : memref<8x128xf32, #tpu.memory_space<vmem>>, vector<8x128xf32>
      %c0_19 = arith.constant 0 : index
      %c0_20 = arith.constant 0 : index
      %22 = vector.load %arg6[%c0_19, %c0_20] : memref<1x128xf32, #tpu.memory_space<vmem>>, vector<1x128xf32>
      %23 = vector.broadcast %22 : vector<1x128xf32> to vector<8x128xf32>
      %24 = arith.addf %21, %23 : vector<8x128xf32>
      %c0_21 = arith.constant 0 : index
      %c0_22 = arith.constant 0 : index
      %25 = vector.load %arg9[%c0_21, %c0_22] : memref<8x128xf32, #tpu.memory_space<vmem>>, vector<8x128xf32>
      tpu.vector_store %arg9[%c0_21, %c0_22], %24 {strides = array<i32>} : memref<8x128xf32, #tpu.memory_space<vmem>>, vector<8x128xf32>,
    } else {
    }
    return
  }
  func.func @transform_0(%arg0: i32, %arg1: i32, %arg2: i32) -> (i32, i32) {
    %c0_i32 = arith.constant 0 : i32
    return %arg0, %arg2 : i32, i32
  }
  func.func @transform_1(%arg0: i32, %arg1: i32, %arg2: i32) -> (i32, i32) {
    %c0_i32 = arith.constant 0 : i32
    return %arg2, %arg1 : i32, i32
  }
  func.func @transform_2(%arg0: i32, %arg1: i32, %arg2: i32) -> (i32, i32) {
    %c0_i32 = arith.constant 0 : i32
    return %arg2, %arg1 : i32, i32
  }
  func.func @transform_3(%arg0: i32, %arg1: i32, %arg2: i32) -> (i32, i32) {
    %c0_i32 = arith.constant 0 : i32
    %c0_i32_0 = arith.constant 0 : i32
    return %c0_i32, %arg1 : i32, i32
  }
  func.func @transform_4(%arg0: i32, %arg1: i32, %arg2: i32) -> (i32, i32) {
    %c0_i32 = arith.constant 0 : i32
    %c0_i32_0 = arith.constant 0 : i32
    return %c0_i32, %arg2 : i32, i32
  }
  func.func @transform_5(%arg0: i32, %arg1: i32, %arg2: i32) -> (i32, i32) {
    %c0_i32 = arith.constant 0 : i32
    %c0_i32_0 = arith.constant 0 : i32
    return %c0_i32, %arg1 : i32, i32
  }
  func.func @transform_6(%arg0: i32, %arg1: i32, %arg2: i32) -> (i32, i32) {
    %c0_i32 = arith.constant 0 : i32
    return %arg0, %arg1 : i32, i32
  }
}

</mosaic_0001>

<llo_original>
// kernel: tpu_custom_call.1
$region0: #{tpu_custom_call.1}
  #allocation0 [shape = 'u32[]', space=smem, size = 0x4, offset = 0x4, fixed_abs, tag = 'smem constant byte address 0x4 - core index']
  #allocation1 [shape = 'u32[144,128]{1,0:T(1,128)}', space=vmem, size = 0x12000, scoped, tag = 'internal scratch']
  #allocation2 [shape = 'f32[8,128]{1,0:T(8,128)}', space=vmem, size = 0x1000, scoped, tag = 'scratch operand']
  %s0 = inlined_call_operand.hbm [shape: f32[8,128], index: 0, kind: input, shape index: {}]
  %s1 = inlined_call_operand.hbm [shape: f32[128,128], index: 1, kind: input, shape index: {}]
  %s2 = inlined_call_operand.hbm [shape: f32[128,128], index: 2, kind: input, shape index: {}]
  %s3 = inlined_call_operand.vmem [shape: f32[1,128], index: 3, kind: input, shape index: {}]
  %s4 = inlined_call_operand.vmem [shape: f32[1,128], index: 4, kind: input, shape index: {}]
  %s5 = inlined_call_operand.vmem [shape: f32[1,128], index: 5, kind: input, shape index: {}]
  %s6 = inlined_call_operand.hbm [shape: f32[8,128], index: 6, kind: output, shape index: {}]
  %s7 = sld [smem:[#allocation0]]
  $region54: #{tpu_custom_call.1} parent=0
    _
  %s9 = ssub.s32 1, %s7
  %s10 = scalar_select 0, %s9, %s7
  $region1: #{tpu_custom_call.1} parent=0
    #allocation3 [shape = 'u8[4096]{0}', space=vmem, size = 0x1000, scoped, tag = 'input window, operand 0, single buffered']
    #allocation4 [shape = 's32[1]{0}', space=sflag, size = 0x4, scoped, tag = 'scoped memory for tpu_custom_call.1']
    #allocation5 [shape = 's32[1]{0}', space=sflag, size = 0x4, scoped, tag = 'scoped memory for tpu_custom_call.1']
    #allocation6 [shape = 'u8[65536]{0}', space=vmem, size = 0x10000, scoped, tag = 'input window, operand 1, single buffered']
    #allocation7 [shape = 's32[1]{0}', space=sflag, size = 0x4, scoped, tag = 'scoped memory for tpu_custom_call.1']
    #allocation8 [shape = 'u8[65536]{0}', space=vmem, size = 0x10000, scoped, tag = 'input window, operand 2, single buffered']
    #allocation9 [shape = 'u8[4096]{0}', space=vmem, size = 0x1000, scoped, tag = 'output window, operand 0, single buffered']
    %11 = vsyncpa [#allocation4], 0
    %12 = vsyncpa [#allocation7], 0
    %13 = vsyncpa [#allocation5], 0
    // Predicated region
    $region2: #{tpu_custom_call.1} parent=1 // pred_check
      _
    $region3: #{tpu_custom_call.1} parent=1 // pred_check_branch
      %15 = sbr.rel (0) target = $region5
    $region4: #{tpu_custom_call.1} parent=1 // pred_region
      %s17 = ssub.s32 128, 128
      %18 = vsyncadd [#allocation4], %s17
      %s20 = sshll.u32 [#allocation3], 4
      %s21 = int_to_ptr.vmem [resolvable:$true] %s20
      %23 = dma.hbm_to_vmem [thread:$0]  %s0, 128, %s21, [#allocation4]
    $region5: #{tpu_custom_call.1} parent=1 // pred_fallthru
      _
    // Predicated region
    $region6: #{tpu_custom_call.1} parent=1 // pred_check
      _
    $region7: #{tpu_custom_call.1} parent=1 // pred_check_branch
      %25 = sbr.rel (0) target = $region9
    $region8: #{tpu_custom_call.1} parent=1 // pred_region
      %s27 = ssub.s32 2048, 2048
      %28 = vsyncadd [#allocation7], %s27
      %s29 = sshll.u32 [#allocation6], 4
      %s30 = int_to_ptr.vmem [resolvable:$true] %s29
      %35 = dma.hbm_to_vmem [thread:$0]  %s1, 2048, %s30, [#allocation7], 128, 128, 8
    $region9: #{tpu_custom_call.1} parent=1 // pred_fallthru
      _
    // Predicated region
    $region10: #{tpu_custom_call.1} parent=1 // pred_check
      _
    $region11: #{tpu_custom_call.1} parent=1 // pred_check_branch
      %37 = sbr.rel (0) target = $region13
    $region12: #{tpu_custom_call.1} parent=1 // pred_region
      %s39 = ssub.s32 2048, 2048
      %40 = vsyncadd [#allocation7], %s39
      %s41 = sshll.u32 [#allocation8], 4
      %s42 = int_to_ptr.vmem [resolvable:$true] %s41
      %47 = dma.hbm_to_vmem [thread:$0]  %s2, 2048, %s42, [#allocation7], 128, 128, 8
    $region13: #{tpu_custom_call.1} parent=1 // pred_fallthru
      _
    // Predicated region
    $region14: #{tpu_custom_call.1} parent=1 // pred_check
      _
    $region15: #{tpu_custom_call.1} parent=1 // pred_check_branch
      %49 = sbr.rel (0) target = $region17
    $region16: #{tpu_custom_call.1} parent=1 // pred_region
      _
    $region17: #{tpu_custom_call.1} parent=1 // pred_fallthru
      _
    // Predicated region
    $region18: #{tpu_custom_call.1} parent=1 // pred_check
      _
    $region19: #{tpu_custom_call.1} parent=1 // pred_check_branch
      %51 = sbr.rel (0) target = $region21
    $region20: #{tpu_custom_call.1} parent=1 // pred_region
      _
    $region21: #{tpu_custom_call.1} parent=1 // pred_fallthru
      _
    // Predicated region
    $region22: #{tpu_custom_call.1} parent=1 // pred_check
      _
    $region23: #{tpu_custom_call.1} parent=1 // pred_check_branch
      %53 = sbr.rel (0) target = $region25
    $region24: #{tpu_custom_call.1} parent=1 // pred_region
      _
    $region25: #{tpu_custom_call.1} parent=1 // pred_fallthru
      _
    // Predicated region
    $region26: #{tpu_custom_call.1} parent=1 // pred_check
      _
    $region27: #{tpu_custom_call.1} parent=1 // pred_check_branch
      %55 = sbr.rel (0) target = $region29
    $region28: #{tpu_custom_call.1} parent=1 // pred_region
      %56 = dma.done [#allocation4], 128
    $region29: #{tpu_custom_call.1} parent=1 // pred_fallthru
      _
    // Predicated region
    $region30: #{tpu_custom_call.1} parent=1 // pred_check
      _
    $region31: #{tpu_custom_call.1} parent=1 // pred_check_branch
      %58 = sbr.rel (0) target = $region33
    $region32: #{tpu_custom_call.1} parent=1 // pred_region
      %59 = dma.done [#allocation7], 2048
    $region33: #{tpu_custom_call.1} parent=1 // pred_fallthru
      _
    // Predicated region
    $region34: #{tpu_custom_call.1} parent=1 // pred_check
      _
    $region35: #{tpu_custom_call.1} parent=1 // pred_check_branch
      %61 = sbr.rel (0) target = $region37
    $region36: #{tpu_custom_call.1} parent=1 // pred_region
      %62 = dma.done [#allocation7], 2048
    $region37: #{tpu_custom_call.1} parent=1 // pred_fallthru
      _
    %p63 = scmp.eq.s32.totalorder 0, 0
    // Predicated region
    $region38: #{tpu_custom_call.1} parent=1 // pred_check
      %p64 = pneg %p63
    $region39: #{tpu_custom_call.1} parent=1 // pred_check_branch
      %66 = sbr.rel (%p64) target = $region41
    $region40: #{tpu_custom_call.1} parent=1 // pred_region
      %67 = vst [vmem:[#allocation2] sm:$0xff] 0.0
    $region41: #{tpu_custom_call.1} parent=1 // pred_fallthru
      _
    %v68 = vld [vmem:[#allocation3] sm:$0xff]
    %v69 = vld [vmem:[#allocation6] sm:$0xff]
    %v70 = vld [vmem:[#allocation6 + $0x8] sm:$0xff]
    %v71 = vld [vmem:[#allocation6 + $0x10] sm:$0xff]
    %v72 = vld [vmem:[#allocation6 + $0x18] sm:$0xff]
    %v73 = vld [vmem:[#allocation6 + $0x20] sm:$0xff]
    %v74 = vld [vmem:[#allocation6 + $0x28] sm:$0xff]
    %v75 = vld [vmem:[#allocation6 + $0x30] sm:$0xff]
    %v76 = vld [vmem:[#allocation6 + $0x38] sm:$0xff]
    %v77 = vld [vmem:[#allocation6 + $0x40] sm:$0xff]
    %v78 = vld [vmem:[#allocation6 + $0x48] sm:$0xff]
    %v79 = vld [vmem:[#allocation6 + $0x50] sm:$0xff]
    %v80 = vld [vmem:[#allocation6 + $0x58] sm:$0xff]
    %v81 = vld [vmem:[#allocation6 + $0x60] sm:$0xff]
    %v82 = vld [vmem:[#allocation6 + $0x68] sm:$0xff]
    %v83 = vld [vmem:[#allocation6 + $0x70] sm:$0xff]
    %v84 = vld [vmem:[#allocation6 + $0x78] sm:$0xff]
    %v85 = vld [vmem:[%s4] sm:$0x1]
    %v87 = vlaneseq
    %v88 = vshrl.u32 %v87, 7
    %v89 = vsub.s32 0, %v88
    %v90 = vrot.slane %v85, %v89
    %v92 = vmul.f32 %v68, %v90
    %v93 = vld [vmem:[#allocation8] sm:$0xff]
    %v94 = vld [vmem:[#allocation8 + $0x8] sm:$0xff]
    %v95 = vld [vmem:[#allocation8 + $0x10] sm:$0xff]
    %v96 = vld [vmem:[#allocation8 + $0x18] sm:$0xff]
    %v97 = vld [vmem:[#allocation8 + $0x20] sm:$0xff]
    %v98 = vld [vmem:[#allocation8 + $0x28] sm:$0xff]
    %v99 = vld [vmem:[#allocation8 + $0x30] sm:$0xff]
    %v100 = vld [vmem:[#allocation8 + $0x38] sm:$0xff]
    %v101 = vld [vmem:[#allocation8 + $0x40] sm:$0xff]
    %v102 = vld [vmem:[#allocation8 + $0x48] sm:$0xff]
    %v103 = vld [vmem:[#allocation8 + $0x50] sm:$0xff]
    %v104 = vld [vmem:[#allocation8 + $0x58] sm:$0xff]
    %v105 = vld [vmem:[#allocation8 + $0x60] sm:$0xff]
    %v106 = vld [vmem:[#allocation8 + $0x68] sm:$0xff]
    %v107 = vld [vmem:[#allocation8 + $0x70] sm:$0xff]
    %v108 = vld [vmem:[#allocation8 + $0x78] sm:$0xff]
    %109 = vmatprep.subr.mxu0 0.0
    %110 = vmatpush1.msra.mxu0 %v108
    %111 = vmatprep.subr.mxu0 0.0
    %112 = vmatpush1.msra.mxu0 %v107
    %113 = vmatprep.subr.mxu0 0.0
    %114 = vmatpush1.msra.mxu0 %v106
    %115 = vmatprep.subr.mxu0 0.0
    %116 = vmatpush1.msra.mxu0 %v105
    %117 = vmatprep.subr.mxu0 0.0
    %118 = vmatpush1.msra.mxu0 %v104
    %119 = vmatprep.subr.mxu0 0.0
    %120 = vmatpush1.msra.mxu0 %v103
    %121 = vmatprep.subr.mxu0 0.0
    %122 = vmatpush1.msra.mxu0 %v102
    %123 = vmatprep.subr.mxu0 0.0
    %124 = vmatpush1.msra.mxu0 %v101
    %125 = vmatprep.subr.mxu0 0.0
    %126 = vmatpush1.msra.mxu0 %v100
    %127 = vmatprep.subr.mxu0 0.0
    %128 = vmatpush1.msra.mxu0 %v99
    %129 = vmatprep.subr.mxu0 0.0
    %130 = vmatpush1.msra.mxu0 %v98
    %131 = vmatprep.subr.mxu0 0.0
    %132 = vmatpush1.msra.mxu0 %v97
    %133 = vmatprep.subr.mxu0 0.0
    %134 = vmatpush1.msra.mxu0 %v96
    %135 = vmatprep.subr.mxu0 0.0
    %136 = vmatpush1.msra.mxu0 %v95
    %137 = vmatprep.subr.mxu0 0.0
    %138 = vmatpush1.msra.mxu0 %v94
    %139 = vmatprep.subr.mxu0 0.0
    %140 = vmatpush1.msra.mxu0 %v93
    %141 = vmatprep.subr.mxu0 0.0
    %142 = vmatpush2.msra.mxu0 0.0
    %143 = vmatprep.subr.mxu0 0.0
    %144 = vmatpush2.msra.mxu0 0.0
    %145 = vmatprep.subr.mxu0 0.0
    %146 = vmatpush2.msra.mxu0 0.0
    %147 = vmatprep.subr.mxu0 0.0
    %148 = vmatpush2.msra.mxu0 0.0
    %149 = vmatprep.subr.mxu0 0.0
    %150 = vmatpush2.msra.mxu0 0.0
    %151 = vmatprep.subr.mxu0 0.0
    %152 = vmatpush2.msra.mxu0 0.0
    %153 = vmatprep.subr.mxu0 0.0
    %154 = vmatpush2.msra.mxu0 0.0
    %155 = vmatprep.subr.mxu0 0.0
    %156 = vmatpush2.msra.mxu0 0.0
    %157 = vmatprep.subr.mxu0 0.0
    %158 = vmatpush2.msra.mxu0 0.0
    %159 = vmatprep.subr.mxu0 0.0
    %160 = vmatpush2.msra.mxu0 0.0
    %161 = vmatprep.subr.mxu0 0.0
    %162 = vmatpush2.msra.mxu0 0.0
    %163 = vmatprep.subr.mxu0 0.0
    %164 = vmatpush2.msra.mxu0 0.0
    %165 = vmatprep.subr.mxu0 0.0
    %166 = vmatpush2.msra.mxu0 0.0
    %167 = vmatprep.subr.mxu0 0.0
    %168 = vmatpush2.msra.mxu0 0.0
    %169 = vmatprep.subr.mxu0 0.0
    %170 = vmatpush2.msra.mxu0 0.0
    %171 = vmatprep.subr.mxu0 0.0
    %172 = vmatpush2.msra.mxu0 0.0
    %173 = vmatprep.mubr.f32.mxu0 0.0
    %174 = vmatmul.mubr.f32.gmra.mxu0 %v92
    %v175 = vpop.f32.mrf.mxu0
    %v176 = vadd.f32 0.0, %v175
    %v177 = vpop.f32.mrf.mxu0
    %178 = vdwg.mxu0
    %v179 = vld [vmem:[#allocation2] sm:$0xff]
    %v180 = vld [vmem:[%s5] sm:$0x1]
    %v182 = vlaneseq
    %v183 = vshrl.u32 %v182, 7
    %v184 = vsub.s32 0, %v183
    %v185 = vrot.slane %v180, %v184
    %v187 = vmul.f32 %v185, %v176
    %188 = vmatprep.subr.mxu0 0.0
    %189 = vmatpush1.msra.mxu0 %v84
    %190 = vmatprep.subr.mxu0 0.0
    %191 = vmatpush1.msra.mxu0 %v83
    %192 = vmatprep.subr.mxu0 0.0
    %193 = vmatpush1.msra.mxu0 %v82
    %194 = vmatprep.subr.mxu0 0.0
    %195 = vmatpush1.msra.mxu0 %v81
    %196 = vmatprep.subr.mxu0 0.0
    %197 = vmatpush1.msra.mxu0 %v80
    %198 = vmatprep.subr.mxu0 0.0
    %199 = vmatpush1.msra.mxu0 %v79
    %200 = vmatprep.subr.mxu0 0.0
    %201 = vmatpush1.msra.mxu0 %v78
    %202 = vmatprep.subr.mxu0 0.0
    %203 = vmatpush1.msra.mxu0 %v77
    %204 = vmatprep.subr.mxu0 0.0
    %205 = vmatpush1.msra.mxu0 %v76
    %206 = vmatprep.subr.mxu0 0.0
    %207 = vmatpush1.msra.mxu0 %v75
    %208 = vmatprep.subr.mxu0 0.0
    %209 = vmatpush1.msra.mxu0 %v74
    %210 = vmatprep.subr.mxu0 0.0
    %211 = vmatpush1.msra.mxu0 %v73
    %212 = vmatprep.subr.mxu0 0.0
    %213 = vmatpush1.msra.mxu0 %v72
    %214 = vmatprep.subr.mxu0 0.0
    %215 = vmatpush1.msra.mxu0 %v71
    %216 = vmatprep.subr.mxu0 0.0
    %217 = vmatpush1.msra.mxu0 %v70
    %218 = vmatprep.subr.mxu0 0.0
    %219 = vmatpush1.msra.mxu0 %v69
    %220 = vmatprep.subr.mxu0 0.0
    %221 = vmatpush2.msra.mxu0 0.0
    %222 = vmatprep.subr.mxu0 0.0
    %223 = vmatpush2.msra.mxu0 0.0
    %224 = vmatprep.subr.mxu0 0.0
    %225 = vmatpush2.msra.mxu0 0.0
    %226 = vmatprep.subr.mxu0 0.0
    %227 = vmatpush2.msra.mxu0 0.0
    %228 = vmatprep.subr.mxu0 0.0
    %229 = vmatpush2.msra.mxu0 0.0
    %230 = vmatprep.subr.mxu0 0.0
    %231 = vmatpush2.msra.mxu0 0.0
    %232 = vmatprep.subr.mxu0 0.0
    %233 = vmatpush2.msra.mxu0 0.0
    %234 = vmatprep.subr.mxu0 0.0
    %235 = vmatpush2.msra.mxu0 0.0
    %236 = vmatprep.subr.mxu0 0.0
    %237 = vmatpush2.msra.mxu0 0.0
    %238 = vmatprep.subr.mxu0 0.0
    %239 = vmatpush2.msra.mxu0 0.0
    %240 = vmatprep.subr.mxu0 0.0
    %241 = vmatpush2.msra.mxu0 0.0
    %242 = vmatprep.subr.mxu0 0.0
    %243 = vmatpush2.msra.mxu0 0.0
    %244 = vmatprep.subr.mxu0 0.0
    %245 = vmatpush2.msra.mxu0 0.0
    %246 = vmatprep.subr.mxu0 0.0
    %247 = vmatpush2.msra.mxu0 0.0
    %248 = vmatprep.subr.mxu0 0.0
    %249 = vmatpush2.msra.mxu0 0.0
    %250 = vmatprep.subr.mxu0 0.0
    %251 = vmatpush2.msra.mxu0 0.0
    %252 = vmatprep.mubr.f32.mxu0 0.0
    %253 = vmatmul.mubr.f32.gmra.mxu0 %v68
    %v254 = vpop.f32.mrf.mxu0
    %v255 = vadd.f32 %v187, %v254
    %v256 = vpop.f32.mrf.mxu0
    %257 = vdwg.mxu0
    %v258 = vadd.f32 %v179, %v255
    %259 = vst [vmem:[#allocation2] sm:$0xff] %v258
    // Predicated region
    $region42: #{tpu_custom_call.1} parent=1 // pred_check
      %p260 = pneg %p63
    $region43: #{tpu_custom_call.1} parent=1 // pred_check_branch
      %262 = sbr.rel (%p260) target = $region45
    $region44: #{tpu_custom_call.1} parent=1 // pred_region
      %v263 = vld [vmem:[#allocation2] sm:$0xff]
      %v264 = vld [vmem:[%s3] sm:$0x1]
      %v266 = vlaneseq
      %v267 = vshrl.u32 %v266, 7
      %v268 = vsub.s32 0, %v267
      %v269 = vrot.slane %v264, %v268
      %v271 = vadd.f32 %v263, %v269
      %272 = vst [vmem:[#allocation9] sm:$0xff] %v271
    $region45: #{tpu_custom_call.1} parent=1 // pred_fallthru
      _
    // Predicated region
    $region46: #{tpu_custom_call.1} parent=1 // pred_check
      _
    $region47: #{tpu_custom_call.1} parent=1 // pred_check_branch
      %274 = sbr.rel (0) target = $region49
    $region48: #{tpu_custom_call.1} parent=1 // pred_region
      %s276 = ssub.s32 128, 128
      %277 = vsyncadd [#allocation5], %s276
      %s279 = sshll.u32 [#allocation9], 4
      %s280 = int_to_ptr.vmem [resolvable:$true] %s279
      %282 = dma.vmem_to_hbm [thread:$0]  %s280, 128, %s6, [#allocation5]
    $region49: #{tpu_custom_call.1} parent=1 // pred_fallthru
      _
    // Predicated region
    $region50: #{tpu_custom_call.1} parent=1 // pred_check
      _
    $region51: #{tpu_custom_call.1} parent=1 // pred_check_branch
      %284 = sbr.rel (0) target = $region53
    $region52: #{tpu_custom_call.1} parent=1 // pred_region
      %285 = dma.done [#allocation5], 128
    $region53: #{tpu_custom_call.1} parent=1 // pred_fallthru
      _
    %286 = vsyncpa [#allocation4], 1
    %287 = vsyncpa [#allocation7], 1
    %288 = vsyncpa [#allocation5], 1

</llo_original>
